<compile_context>
chip_gen: v7x
topology: tpu7x:2x2x1
jax: 0.10.0
libtpu: 0.0.40
codegen_flags: <defaults>
</compile_context>

<pallas_src>
import math

import jax
import jax.numpy as jnp
from jax.experimental import pallas as pl
from jax.experimental.pallas import tpu as pltpu


def _round_up(x: int, m: int) -> int:
    return ((x + m - 1) // m) * m


def _pe_kernel(coords_ref, sel_ref, freq_ref, phase_ref, out_ref):
    # coords_ref: (TM, in_dim)     sel_ref:   (in_dim, d_model)
    # freq_ref:   (1, d_model)     phase_ref: (1, d_model)
    # out_ref:    (TM, d_model)
    expanded = jnp.dot(
        coords_ref[...],
        sel_ref[...],
        precision=jax.lax.Precision.HIGHEST,   # keep full f32 coords through the MXU
        preferred_element_type=jnp.float32,
    )                                           # (TM, d_model): column col holds coords[:, col_d[col]]
    # One fused lane-dense formula; sin(x + pi/2) == cos(x) for the cos lanes.
    out_ref[...] = jnp.sin(expanded * freq_ref[...] + phase_ref[...])


def spatial_positional_encoding(coords: jax.Array, d_model: int, in_dim: int = 6,
                                tile_m: int = 1024) -> jax.Array:
    """Pallas TPU forward pass of SpatialPositionalEncoding."""
    assert d_model % (2 * in_dim) == 0, "d_model must be divisible by 2 * in_dim"
    B, N, cdim = coords.shape
    assert cdim == in_dim
    F = d_model // (2 * in_dim)

    # Kernel computes in f32 (matches the PyTorch f32 freqs buffer).
    coords = coords.astype(jnp.float32)

    # ---- tiny host-side constants (lane-dense helpers) --------------------------
    freqs = jnp.exp(
        jnp.arange(0, F, dtype=jnp.float32) * (-math.log(10000.0) / F)
    )                                                                   # (F,)
    # Output column -> owning input dim: col_d[d*2F + j] = d
    col_d = jnp.repeat(jnp.arange(in_dim, dtype=jnp.int32), 2 * F)      # (d_model,)
    # 0/1 selection matrix: (coords @ sel)[:, col] == coords[:, col_d[col]]
    sel = (col_d[None, :] == jnp.arange(in_dim, dtype=jnp.int32)[:, None]
           ).astype(jnp.float32)                                        # (in_dim, d_model)
    # Frequencies tiled over the [sin | cos] halves of every input dim.
    freq_full = jnp.tile(jnp.concatenate([freqs, freqs]), in_dim).reshape(1, d_model)
    # Phase: 0 for sin lanes, pi/2 for cos lanes.
    phase = jnp.tile(
        jnp.concatenate([jnp.zeros((F,), jnp.float32),
                         jnp.full((F,), math.pi / 2, dtype=jnp.float32)]),
        in_dim,
    ).reshape(1, d_model)

    # ---- flatten (B, N) -> M rows and pick a VMEM-friendly row tile --------------
    M = B * N
    # Keep the double-buffered output block small (~<= 4 MiB per buffer) so it fits
    # the default scoped VMEM on all generations, including v7x's 64 MiB physical.
    vmem_rows = max(8, (((1 << 20) // d_model) // 8) * 8)   # TM*d_model*4B <= 4 MiB
    TM = min(tile_m, vmem_rows, _round_up(M, 8))            # multiple of 8 (f32 sublane)
    M_pad = _round_up(M, TM)

    coords_flat = coords.reshape(M, in_dim)
    if M_pad != M:
        coords_flat = jnp.pad(coords_flat, ((0, M_pad - M), (0, 0)))

    out_flat = pl.pallas_call(
        _pe_kernel,
        out_shape=jax.ShapeDtypeStruct((M_pad, d_model), jnp.float32),
        grid_spec=pltpu.PrefetchScalarGridSpec(
            num_scalar_prefetch=0,
            grid=(M_pad // TM,),
            in_specs=[
                pl.BlockSpec((TM, in_dim), lambda i: (i, 0)),        # coords rows
                pl.BlockSpec((in_dim, d_model), lambda i: (0, 0)),   # selection matrix
                pl.BlockSpec((1, d_model), lambda i: (0, 0)),        # freq_full
                pl.BlockSpec((1, d_model), lambda i: (0, 0)),        # phase
            ],
            out_specs=pl.BlockSpec((TM, d_model), lambda i: (i, 0)),
        ),
        compiler_params=pltpu.CompilerParams(
            dimension_semantics=("parallel",),   # row grid shards across v7x's 2 TCs
        ),
    )(coords_flat, sel, freq_full, phase)

    return out_flat[:M].reshape(B, N, d_model)


def _reference(coords, d_model, in_dim):
    # Pure-JAX reference mirroring the PyTorch forward.
    B, N, _ = coords.shape
    F = d_model // (2 * in_dim)
    freqs = jnp.exp(jnp.arange(0, F, dtype=jnp.float32) * (-math.log(10000.0) / F))
    angles = coords[..., None].astype(jnp.float32) * freqs.reshape(1, 1, 1, F)
    pe = jnp.concatenate([jnp.sin(angles), jnp.cos(angles)], axis=-1)   # (B, N, in_dim, 2F)
    return pe.reshape(B, N, d_model)


if __name__ == "__main__":
    B, N, in_dim = 2, 8, 6
    d_model = 48   # divisible by 2 * in_dim -> F = 4

    key = jax.random.PRNGKey(0)
    coords = jax.random.normal(key, (B, N, in_dim), dtype=jnp.float32)

    pe = spatial_positional_encoding(coords, d_model, in_dim)
    pe = jax.block_until_ready(pe)

    ref = _reference(coords, d_model, in_dim)
    assert pe.shape == (B, N, d_model)
    assert jnp.allclose(pe, ref, atol=1e-5, rtol=1e-5)

    # Also exercise the multi-step grid + row-padding path (still small).
    B2, N2 = 4, 300   # M = 1200 -> TM = 512, padded to 1536, grid = (3,)
    coords2 = jax.random.normal(jax.random.PRNGKey(1), (B2, N2, in_dim), dtype=jnp.float32)
    pe2 = jax.block_until_ready(
        spatial_positional_encoding(coords2, d_model, in_dim, tile_m=512))
    ref2 = _reference(coords2, d_model, in_dim)
    assert pe2.shape == (B2, N2, d_model)
    assert jnp.allclose(pe2, ref2, atol=1e-5, rtol=1e-5)

    print("KERNEL_OK")
</pallas_src>

<mosaic_0001>
module attributes {stable_mosaic.version = 11 : i64} {
  func.func @_pe_kernel(%arg0: i32, %arg1: memref<16x6xf32, #tpu.memory_space<vmem>>, %arg2: memref<6x48xf32, #tpu.memory_space<vmem>>, %arg3: memref<1x48xf32, #tpu.memory_space<vmem>>, %arg4: memref<1x48xf32, #tpu.memory_space<vmem>>, %arg5: memref<16x48xf32, #tpu.memory_space<vmem>>) attributes {dimension_semantics = [#tpu.dimension_semantics<parallel>], iteration_bounds = array<i64: 1>, scalar_prefetch = 0 : i64, scratch_operands = 0 : i64, tpu.core_type = #tpu.core_type<tc>, window_params = [{transform_indices = @transform_0, window_bounds = array<i64: 16, 6>}, {pipeline_mode = #tpu.pipeline_mode<synchronous>, transform_indices = @transform_1, window_bounds = array<i64: 6, 48>}, {pipeline_mode = #tpu.pipeline_mode<synchronous>, transform_indices = @transform_2, window_bounds = array<i64: 1, 48>}, {pipeline_mode = #tpu.pipeline_mode<synchronous>, transform_indices = @transform_3, window_bounds = array<i64: 1, 48>}, {transform_indices = @transform_4, window_bounds = array<i64: 16, 48>}]} {
    %c0 = arith.constant 0 : index
    %c0_0 = arith.constant 0 : index
    %0 = vector.load %arg1[%c0, %c0_0] : memref<16x6xf32, #tpu.memory_space<vmem>>, vector<16x6xf32>
    %c0_1 = arith.constant 0 : index
    %c0_2 = arith.constant 0 : index
    %1 = vector.load %arg2[%c0_1, %c0_2] : memref<6x48xf32, #tpu.memory_space<vmem>>, vector<6x48xf32>
    %cst = arith.constant dense<0.000000e+00> : vector<16x48xf32>
    %2 = tpu.matmul %0, %1, %cst {dimension_numbers = #tpu.dot_dimension_numbers<[1], [0], [0], [1], [0, 0, 1, 1], [], []>, precision = #tpu.contract_precision<fp32>} : vector<16x6xf32>, vector<6x48xf32>, vector<16x48xf32> -> vector<16x48xf32>
    %c0_3 = arith.constant 0 : index
    %c0_4 = arith.constant 0 : index
    %3 = vector.load %arg3[%c0_3, %c0_4] : memref<1x48xf32, #tpu.memory_space<vmem>>, vector<1x48xf32>
    %4 = vector.broadcast %3 : vector<1x48xf32> to vector<16x48xf32>
    %5 = arith.mulf %2, %4 : vector<16x48xf32>
    %c0_5 = arith.constant 0 : index
    %c0_6 = arith.constant 0 : index
    %6 = vector.load %arg4[%c0_5, %c0_6] : memref<1x48xf32, #tpu.memory_space<vmem>>, vector<1x48xf32>
    %7 = vector.broadcast %6 : vector<1x48xf32> to vector<16x48xf32>
    %8 = arith.addf %5, %7 : vector<16x48xf32>
    %9 = math.sin %8 : vector<16x48xf32>
    %c0_7 = arith.constant 0 : index
    %c0_8 = arith.constant 0 : index
    %10 = vector.load %arg5[%c0_7, %c0_8] : memref<16x48xf32, #tpu.memory_space<vmem>>, vector<16x48xf32>
    tpu.vector_store %arg5[%c0_7, %c0_8], %9 {strides = array<i32>} : memref<16x48xf32, #tpu.memory_space<vmem>>, vector<16x48xf32>,
    return
  }
  func.func @transform_0(%arg0: i32) -> (i32, i32) {
    %c0_i32 = arith.constant 0 : i32
    %c0_i32_0 = arith.constant 0 : i32
    return %arg0, %c0_i32 : i32, i32
  }
  func.func @transform_1(%arg0: i32) -> (i32, i32) {
    %c0_i32 = arith.constant 0 : i32
    %c0_i32_0 = arith.constant 0 : i32
    %c0_i32_1 = arith.constant 0 : i32
    return %c0_i32, %c0_i32_0 : i32, i32
  }
  func.func @transform_2(%arg0: i32) -> (i32, i32) {
    %c0_i32 = arith.constant 0 : i32
    %c0_i32_0 = arith.constant 0 : i32
    %c0_i32_1 = arith.constant 0 : i32
    return %c0_i32, %c0_i32_0 : i32, i32
  }
  func.func @transform_3(%arg0: i32) -> (i32, i32) {
    %c0_i32 = arith.constant 0 : i32
    %c0_i32_0 = arith.constant 0 : i32
    %c0_i32_1 = arith.constant 0 : i32
    return %c0_i32, %c0_i32_0 : i32, i32
  }
  func.func @transform_4(%arg0: i32) -> (i32, i32) {
    %c0_i32 = arith.constant 0 : i32
    %c0_i32_0 = arith.constant 0 : i32
    return %arg0, %c0_i32 : i32, i32
  }
}

</mosaic_0001>

<llo_original>
// kernel: tpu_custom_call.1
$region0: #{tpu_custom_call.1}
  #allocation0 [shape = 'u32[]', space=smem, size = 0x4, offset = 0x4, fixed_abs, tag = 'smem constant byte address 0x4 - core index']
  #allocation1 [shape = 'u32[144,128]{1,0:T(1,128)}', space=vmem, size = 0x12000, scoped, tag = 'internal scratch']
  %s0 = inlined_call_operand.vmem [shape: f32[16,6], index: 0, kind: input, shape index: {}]
  %s1 = inlined_call_operand.vmem [shape: f32[6,48], index: 1, kind: input, shape index: {}]
  %s2 = inlined_call_operand.vmem [shape: f32[1,48], index: 2, kind: input, shape index: {}]
  %s3 = inlined_call_operand.vmem [shape: f32[1,48], index: 3, kind: input, shape index: {}]
  %s4 = inlined_call_operand.hbm [shape: f32[16,48], index: 4, kind: output, shape index: {}]
  %s5 = sld [smem:[#allocation0]]
  $region26: #{tpu_custom_call.1} parent=0
    _
  %s7 = ssub.s32 1, %s5
  %s8 = scalar_select 0, %s7, %s5
  $region1: #{tpu_custom_call.1} parent=0
    #allocation2 [shape = 'u8[8192]{0}', space=vmem, size = 0x2000, scoped, tag = 'output window, operand 0, single buffered']
    #allocation3 [shape = 's32[1]{0}', space=sflag, size = 0x4, scoped, tag = 'scoped memory for tpu_custom_call.1']
    %9 = vsyncpa [#allocation3], 0
    // Predicated region
    $region2: #{tpu_custom_call.1} parent=1 // pred_check
      _
    $region3: #{tpu_custom_call.1} parent=1 // pred_check_branch
      %11 = sbr.rel (0) target = $region5
    $region4: #{tpu_custom_call.1} parent=1 // pred_region
      _
    $region5: #{tpu_custom_call.1} parent=1 // pred_fallthru
      _
    // Predicated region
    $region6: #{tpu_custom_call.1} parent=1 // pred_check
      _
    $region7: #{tpu_custom_call.1} parent=1 // pred_check_branch
      %13 = sbr.rel (0) target = $region9
    $region8: #{tpu_custom_call.1} parent=1 // pred_region
      _
    $region9: #{tpu_custom_call.1} parent=1 // pred_fallthru
      _
    // Predicated region
    $region10: #{tpu_custom_call.1} parent=1 // pred_check
      _
    $region11: #{tpu_custom_call.1} parent=1 // pred_check_branch
      %15 = sbr.rel (0) target = $region13
    $region12: #{tpu_custom_call.1} parent=1 // pred_region
      _
    $region13: #{tpu_custom_call.1} parent=1 // pred_fallthru
      _
    // Predicated region
    $region14: #{tpu_custom_call.1} parent=1 // pred_check
      _
    $region15: #{tpu_custom_call.1} parent=1 // pred_check_branch
      %17 = sbr.rel (0) target = $region17
    $region16: #{tpu_custom_call.1} parent=1 // pred_region
      _
    $region17: #{tpu_custom_call.1} parent=1 // pred_fallthru
      _
    %v18 = vld [vmem:[%s0] sm:$0xff]
    %v19 = vld [vmem:[%s0 + $0x8] sm:$0xff]
    %v20 = vld [vmem:[%s1] sm:$0x3f]
    %vm21 = vcmask 48128
    %v23 = vsel %vm21, %v18, 0
    %v26 = vsel %vm21, %v19, 0
    %vm28 = vcmask 1045504
    %v30 = vsel %vm28, %v20, 0
    %32 = vmatprep.subr.mxu0 0.0
    %v33 = vand.u32 %v30, 4294901760
    %34 = vmatpush1.msra.mxu0 %v33
    %35 = vmatprep.subr.mxu0 0.0
    %36 = vmatpush1.msra.mxu0 0.0
    %37 = vmatprep.subr.mxu0 0.0
    %38 = vmatpush1.msra.mxu0 0.0
    %39 = vmatprep.subr.mxu0 0.0
    %40 = vmatpush1.msra.mxu0 0.0
    %41 = vmatprep.subr.mxu0 0.0
    %42 = vmatpush1.msra.mxu0 0.0
    %43 = vmatprep.subr.mxu0 0.0
    %44 = vmatpush1.msra.mxu0 0.0
    %45 = vmatprep.subr.mxu0 0.0
    %46 = vmatpush1.msra.mxu0 0.0
    %47 = vmatprep.subr.mxu0 0.0
    %48 = vmatpush1.msra.mxu0 0.0
    %49 = vmatprep.subr.mxu0 0.0
    %50 = vmatpush1.msra.mxu0 0.0
    %51 = vmatprep.subr.mxu0 0.0
    %52 = vmatpush1.msra.mxu0 0.0
    %53 = vmatprep.subr.mxu0 0.0
    %54 = vmatpush1.msra.mxu0 0.0
    %55 = vmatprep.subr.mxu0 0.0
    %56 = vmatpush1.msra.mxu0 0.0
    %57 = vmatprep.subr.mxu0 0.0
    %58 = vmatpush1.msra.mxu0 0.0
    %59 = vmatprep.subr.mxu0 0.0
    %60 = vmatpush1.msra.mxu0 0.0
    %61 = vmatprep.subr.mxu0 0.0
    %62 = vmatpush1.msra.mxu0 0.0
    %63 = vmatprep.subr.mxu0 0.0
    %64 = vmatpush1.msra.mxu0 0.0
    %65 = vmatprep.subr.mxu0 0.0
    %66 = vmatpush1.msra.mxu0 0.0
    %67 = vmatprep.subr.mxu0 0.0
    %68 = vmatpush1.msra.mxu0 0.0
    %69 = vmatprep.subr.mxu0 0.0
    %70 = vmatpush1.msra.mxu0 0.0
    %71 = vmatprep.subr.mxu0 0.0
    %72 = vmatpush1.msra.mxu0 0.0
    %73 = vmatprep.subr.mxu0 0.0
    %74 = vmatpush1.msra.mxu0 0.0
    %75 = vmatprep.subr.mxu0 0.0
    %76 = vmatpush1.msra.mxu0 0.0
    %77 = vmatprep.subr.mxu0 0.0
    %78 = vmatpush1.msra.mxu0 0.0
    %79 = vmatprep.subr.mxu0 0.0
    %80 = vmatpush1.msra.mxu0 0.0
    %81 = vmatprep.subr.mxu0 0.0
    %82 = vmatpush1.msra.mxu0 0.0
    %83 = vmatprep.subr.mxu0 0.0
    %84 = vmatpush1.msra.mxu0 0.0
    %85 = vmatprep.subr.mxu0 0.0
    %86 = vmatpush1.msra.mxu0 0.0
    %87 = vmatprep.subr.mxu0 0.0
    %88 = vmatpush1.msra.mxu0 0.0
    %89 = vmatprep.subr.mxu0 0.0
    %90 = vmatpush1.msra.mxu0 0.0
    %91 = vmatprep.subr.mxu0 0.0
    %92 = vmatpush1.msra.mxu0 0.0
    %93 = vmatprep.subr.mxu0 0.0
    %94 = vmatpush1.msra.mxu0 0.0
    %95 = vmatprep.subr.mxu0 0.0
    %96 = vmatpush1.msra.mxu0 0.0
    %97 = vmatprep.mubr.f32.mxu0 0.0
    %v98 = vand.u32 %v23, 4294901760
    %v99 = vsub.f32 %v23, %v98
    %v100 = vand.u32 %v99, 4294901760
    %v101 = vsub.f32 %v99, %v100
    %v102 = vand.u32 %v101, 4294901760
    %103 = vmatmul.mubr.f32.gmra.mrb[0].mxu0 %v102
    %v104 = vpop.f32.mrb[0].mxu0
    %v105 = vadd.f32 0.0, %v104
    %v106 = vpop.f32.mrb[0].mxu0
    %107 = vmatprep.mubr.f32.mxu0 0.0
    %v108 = vand.u32 %v26, 4294901760
    %v109 = vsub.f32 %v26, %v108
    %v110 = vand.u32 %v109, 4294901760
    %v111 = vsub.f32 %v109, %v110
    %v112 = vand.u32 %v111, 4294901760
    %113 = vmatmul.mubr.f32.gmra.mrb[0].mxu0 %v112
    %v114 = vpop.f32.mrb[0].mxu0
    %v115 = vadd.f32 0.0, %v114
    %v116 = vpop.f32.mrb[0].mxu0
    %117 = vdwg.mxu0
    %118 = vmatprep.subr.mxu0 0.0
    %v119 = vand.u32 %v30, 4294901760
    %v120 = vsub.f32 %v30, %v119
    %v121 = vand.u32 %v120, 4294901760
    %v122 = vsub.f32 %v120, %v121
    %v123 = vand.u32 %v122, 4294901760
    %124 = vmatpush1.msra.mxu0 %v123
    %125 = vmatprep.subr.mxu0 0.0
    %126 = vmatpush1.msra.mxu0 0.0
    %127 = vmatprep.subr.mxu0 0.0
    %128 = vmatpush1.msra.mxu0 0.0
    %129 = vmatprep.subr.mxu0 0.0
    %130 = vmatpush1.msra.mxu0 0.0
    %131 = vmatprep.subr.mxu0 0.0
    %132 = vmatpush1.msra.mxu0 0.0
    %133 = vmatprep.subr.mxu0 0.0
    %134 = vmatpush1.msra.mxu0 0.0
    %135 = vmatprep.subr.mxu0 0.0
    %136 = vmatpush1.msra.mxu0 0.0
    %137 = vmatprep.subr.mxu0 0.0
    %138 = vmatpush1.msra.mxu0 0.0
    %139 = vmatprep.subr.mxu0 0.0
    %140 = vmatpush1.msra.mxu0 0.0
    %141 = vmatprep.subr.mxu0 0.0
    %142 = vmatpush1.msra.mxu0 0.0
    %143 = vmatprep.subr.mxu0 0.0
    %144 = vmatpush1.msra.mxu0 0.0
    %145 = vmatprep.subr.mxu0 0.0
    %146 = vmatpush1.msra.mxu0 0.0
    %147 = vmatprep.subr.mxu0 0.0
    %148 = vmatpush1.msra.mxu0 0.0
    %149 = vmatprep.subr.mxu0 0.0
    %150 = vmatpush1.msra.mxu0 0.0
    %151 = vmatprep.subr.mxu0 0.0
    %152 = vmatpush1.msra.mxu0 0.0
    %153 = vmatprep.subr.mxu0 0.0
    %154 = vmatpush1.msra.mxu0 0.0
    %155 = vmatprep.subr.mxu0 0.0
    %156 = vmatpush1.msra.mxu0 0.0
    %157 = vmatprep.subr.mxu0 0.0
    %158 = vmatpush1.msra.mxu0 0.0
    %159 = vmatprep.subr.mxu0 0.0
    %160 = vmatpush1.msra.mxu0 0.0
    %161 = vmatprep.subr.mxu0 0.0
    %162 = vmatpush1.msra.mxu0 0.0
    %163 = vmatprep.subr.mxu0 0.0
    %164 = vmatpush1.msra.mxu0 0.0
    %165 = vmatprep.subr.mxu0 0.0
    %166 = vmatpush1.msra.mxu0 0.0
    %167 = vmatprep.subr.mxu0 0.0
    %168 = vmatpush1.msra.mxu0 0.0
    %169 = vmatprep.subr.mxu0 0.0
    %170 = vmatpush1.msra.mxu0 0.0
    %171 = vmatprep.subr.mxu0 0.0
    %172 = vmatpush1.msra.mxu0 0.0
    %173 = vmatprep.subr.mxu0 0.0
    %174 = vmatpush1.msra.mxu0 0.0
    %175 = vmatprep.subr.mxu0 0.0
    %176 = vmatpush1.msra.mxu0 0.0
    %177 = vmatprep.subr.mxu0 0.0
    %178 = vmatpush1.msra.mxu0 0.0
    %179 = vmatprep.subr.mxu0 0.0
    %180 = vmatpush1.msra.mxu0 0.0
    %181 = vmatprep.subr.mxu0 0.0
    %182 = vmatpush1.msra.mxu0 0.0
    %183 = vmatprep.subr.mxu0 0.0
    %184 = vmatpush1.msra.mxu0 0.0
    %185 = vmatprep.subr.mxu0 0.0
    %186 = vmatpush1.msra.mxu0 0.0
    %187 = vmatprep.mubr.f32.mxu0 0.0
    %v188 = vand.u32 %v23, 4294901760
    %189 = vmatmul.mubr.f32.gmra.mrb[0].mxu0 %v188
    %v190 = vpop.f32.mrb[0].mxu0
    %v191 = vadd.f32 %v105, %v190
    %v192 = vpop.f32.mrb[0].mxu0
    %193 = vmatprep.mubr.f32.mxu0 0.0
    %v194 = vand.u32 %v26, 4294901760
    %195 = vmatmul.mubr.f32.gmra.mrb[0].mxu0 %v194
    %v196 = vpop.f32.mrb[0].mxu0
    %v197 = vadd.f32 %v115, %v196
    %v198 = vpop.f32.mrb[0].mxu0
    %199 = vdwg.mxu0
    %200 = vmatprep.subr.mxu0 0.0
    %v201 = vand.u32 %v30, 4294901760
    %v202 = vsub.f32 %v30, %v201
    %203 = vmatpush1.msra.mxu0 %v202
    %204 = vmatprep.subr.mxu0 0.0
    %205 = vmatpush1.msra.mxu0 0.0
    %206 = vmatprep.subr.mxu0 0.0
    %207 = vmatpush1.msra.mxu0 0.0
    %208 = vmatprep.subr.mxu0 0.0
    %209 = vmatpush1.msra.mxu0 0.0
    %210 = vmatprep.subr.mxu0 0.0
    %211 = vmatpush1.msra.mxu0 0.0
    %212 = vmatprep.subr.mxu0 0.0
    %213 = vmatpush1.msra.mxu0 0.0
    %214 = vmatprep.subr.mxu0 0.0
    %215 = vmatpush1.msra.mxu0 0.0
    %216 = vmatprep.subr.mxu0 0.0
    %217 = vmatpush1.msra.mxu0 0.0
    %218 = vmatprep.subr.mxu0 0.0
    %219 = vmatpush1.msra.mxu0 0.0
    %220 = vmatprep.subr.mxu0 0.0
    %221 = vmatpush1.msra.mxu0 0.0
    %222 = vmatprep.subr.mxu0 0.0
    %223 = vmatpush1.msra.mxu0 0.0
    %224 = vmatprep.subr.mxu0 0.0
    %225 = vmatpush1.msra.mxu0 0.0
    %226 = vmatprep.subr.mxu0 0.0
    %227 = vmatpush1.msra.mxu0 0.0
    %228 = vmatprep.subr.mxu0 0.0
    %229 = vmatpush1.msra.mxu0 0.0
    %230 = vmatprep.subr.mxu0 0.0
    %231 = vmatpush1.msra.mxu0 0.0
    %232 = vmatprep.subr.mxu0 0.0
    %233 = vmatpush1.msra.mxu0 0.0
    %234 = vmatprep.subr.mxu0 0.0
    %235 = vmatpush1.msra.mxu0 0.0
    %236 = vmatprep.subr.mxu0 0.0
    %237 = vmatpush1.msra.mxu0 0.0
    %238 = vmatprep.subr.mxu0 0.0
    %239 = vmatpush1.msra.mxu0 0.0
    %240 = vmatprep.subr.mxu0 0.0
    %241 = vmatpush1.msra.mxu0 0.0
    %242 = vmatprep.subr.mxu0 0.0
    %243 = vmatpush1.msra.mxu0 0.0
    %244 = vmatprep.subr.mxu0 0.0
    %245 = vmatpush1.msra.mxu0 0.0
    %246 = vmatprep.subr.mxu0 0.0
    %247 = vmatpush1.msra.mxu0 0.0
    %248 = vmatprep.subr.mxu0 0.0
    %249 = vmatpush1.msra.mxu0 0.0
    %250 = vmatprep.subr.mxu0 0.0
    %251 = vmatpush1.msra.mxu0 0.0
    %252 = vmatprep.subr.mxu0 0.0
    %253 = vmatpush1.msra.mxu0 0.0
    %254 = vmatprep.subr.mxu0 0.0
    %255 = vmatpush1.msra.mxu0 0.0
    %256 = vmatprep.subr.mxu0 0.0
    %257 = vmatpush1.msra.mxu0 0.0
    %258 = vmatprep.subr.mxu0 0.0
    %259 = vmatpush1.msra.mxu0 0.0
    %260 = vmatprep.subr.mxu0 0.0
    %261 = vmatpush1.msra.mxu0 0.0
    %262 = vmatprep.subr.mxu0 0.0
    %263 = vmatpush1.msra.mxu0 0.0
    %264 = vmatprep.subr.mxu0 0.0
    %265 = vmatpush1.msra.mxu0 0.0
    %266 = vmatprep.mubr.f32.mxu0 0.0
    %v267 = vand.u32 %v23, 4294901760
    %v268 = vsub.f32 %v23, %v267
    %269 = vmatmul.mubr.f32.gmra.mrb[0].mxu0 %v268
    %v270 = vpop.f32.mrb[0].mxu0
    %v271 = vadd.f32 %v191, %v270
    %v272 = vpop.f32.mrb[0].mxu0
    %273 = vmatprep.mubr.f32.mxu0 0.0
    %v274 = vand.u32 %v26, 4294901760
    %v275 = vsub.f32 %v26, %v274
    %276 = vmatmul.mubr.f32.gmra.mrb[0].mxu0 %v275
    %v277 = vpop.f32.mrb[0].mxu0
    %v278 = vadd.f32 %v197, %v277
    %v279 = vpop.f32.mrb[0].mxu0
    %280 = vdwg.mxu0
    %281 = vmatprep.subr.mxu0 0.0
    %v282 = vand.u32 %v30, 4294901760
    %283 = vmatpush1.msra.mxu0 %v282
    %284 = vmatprep.subr.mxu0 0.0
    %285 = vmatpush1.msra.mxu0 0.0
    %286 = vmatprep.subr.mxu0 0.0
    %287 = vmatpush1.msra.mxu0 0.0
    %288 = vmatprep.subr.mxu0 0.0
    %289 = vmatpush1.msra.mxu0 0.0
    %290 = vmatprep.subr.mxu0 0.0
    %291 = vmatpush1.msra.mxu0 0.0
    %292 = vmatprep.subr.mxu0 0.0
    %293 = vmatpush1.msra.mxu0 0.0
    %294 = vmatprep.subr.mxu0 0.0
    %295 = vmatpush1.msra.mxu0 0.0
    %296 = vmatprep.subr.mxu0 0.0
    %297 = vmatpush1.msra.mxu0 0.0
    %298 = vmatprep.subr.mxu0 0.0
    %299 = vmatpush1.msra.mxu0 0.0
    %300 = vmatprep.subr.mxu0 0.0
    %301 = vmatpush1.msra.mxu0 0.0
    %302 = vmatprep.subr.mxu0 0.0
    %303 = vmatpush1.msra.mxu0 0.0
    %304 = vmatprep.subr.mxu0 0.0
    %305 = vmatpush1.msra.mxu0 0.0
    %306 = vmatprep.subr.mxu0 0.0
    %307 = vmatpush1.msra.mxu0 0.0
    %308 = vmatprep.subr.mxu0 0.0
    %309 = vmatpush1.msra.mxu0 0.0
    %310 = vmatprep.subr.mxu0 0.0
    %311 = vmatpush1.msra.mxu0 0.0
    %312 = vmatprep.subr.mxu0 0.0
    %313 = vmatpush1.msra.mxu0 0.0
    %314 = vmatprep.subr.mxu0 0.0
    %315 = vmatpush1.msra.mxu0 0.0
    %316 = vmatprep.subr.mxu0 0.0
    %317 = vmatpush1.msra.mxu0 0.0
    %318 = vmatprep.subr.mxu0 0.0
    %319 = vmatpush1.msra.mxu0 0.0
    %320 = vmatprep.subr.mxu0 0.0
    %321 = vmatpush1.msra.mxu0 0.0
    %322 = vmatprep.subr.mxu0 0.0
    %323 = vmatpush1.msra.mxu0 0.0
    %324 = vmatprep.subr.mxu0 0.0
    %325 = vmatpush1.msra.mxu0 0.0
    %326 = vmatprep.subr.mxu0 0.0
    %327 = vmatpush1.msra.mxu0 0.0
    %328 = vmatprep.subr.mxu0 0.0
    %329 = vmatpush1.msra.mxu0 0.0
    %330 = vmatprep.subr.mxu0 0.0
    %331 = vmatpush1.msra.mxu0 0.0
    %332 = vmatprep.subr.mxu0 0.0
    %333 = vmatpush1.msra.mxu0 0.0
    %334 = vmatprep.subr.mxu0 0.0
    %335 = vmatpush1.msra.mxu0 0.0
    %336 = vmatprep.subr.mxu0 0.0
    %337 = vmatpush1.msra.mxu0 0.0
    %338 = vmatprep.subr.mxu0 0.0
    %339 = vmatpush1.msra.mxu0 0.0
    %340 = vmatprep.subr.mxu0 0.0
    %341 = vmatpush1.msra.mxu0 0.0
    %342 = vmatprep.subr.mxu0 0.0
    %343 = vmatpush1.msra.mxu0 0.0
    %344 = vmatprep.subr.mxu0 0.0
    %345 = vmatpush1.msra.mxu0 0.0
    %346 = vmatprep.mubr.f32.mxu0 0.0
    %v347 = vand.u32 %v23, 4294901760
    %v348 = vsub.f32 %v23, %v347
    %v349 = vand.u32 %v348, 4294901760
    %350 = vmatmul.mubr.f32.gmra.mrb[0].mxu0 %v349
    %v351 = vpop.f32.mrb[0].mxu0
    %v352 = vadd.f32 %v271, %v351
    %v353 = vpop.f32.mrb[0].mxu0
    %354 = vmatprep.mubr.f32.mxu0 0.0
    %v355 = vand.u32 %v26, 4294901760
    %v356 = vsub.f32 %v26, %v355
    %v357 = vand.u32 %v356, 4294901760
    %358 = vmatmul.mubr.f32.gmra.mrb[0].mxu0 %v357
    %v359 = vpop.f32.mrb[0].mxu0
    %v360 = vadd.f32 %v278, %v359
    %v361 = vpop.f32.mrb[0].mxu0
    %362 = vdwg.mxu0
    %363 = vmatprep.subr.mxu0 0.0
    %v364 = vand.u32 %v30, 4294901760
    %v365 = vsub.f32 %v30, %v364
    %v366 = vand.u32 %v365, 4294901760
    %367 = vmatpush1.msra.mxu0 %v366
    %368 = vmatprep.subr.mxu0 0.0
    %369 = vmatpush1.msra.mxu0 0.0
    %370 = vmatprep.subr.mxu0 0.0
    %371 = vmatpush1.msra.mxu0 0.0
    %372 = vmatprep.subr.mxu0 0.0
    %373 = vmatpush1.msra.mxu0 0.0
    %374 = vmatprep.subr.mxu0 0.0
    %375 = vmatpush1.msra.mxu0 0.0
    %376 = vmatprep.subr.mxu0 0.0
    %377 = vmatpush1.msra.mxu0 0.0
    %378 = vmatprep.subr.mxu0 0.0
    %379 = vmatpush1.msra.mxu0 0.0
    %380 = vmatprep.subr.mxu0 0.0
    %381 = vmatpush1.msra.mxu0 0.0
    %382 = vmatprep.subr.mxu0 0.0
    %383 = vmatpush1.msra.mxu0 0.0
    %384 = vmatprep.subr.mxu0 0.0
    %385 = vmatpush1.msra.mxu0 0.0
    %386 = vmatprep.subr.mxu0 0.0
    %387 = vmatpush1.msra.mxu0 0.0
    %388 = vmatprep.subr.mxu0 0.0
    %389 = vmatpush1.msra.mxu0 0.0
    %390 = vmatprep.subr.mxu0 0.0
    %391 = vmatpush1.msra.mxu0 0.0
    %392 = vmatprep.subr.mxu0 0.0
    %393 = vmatpush1.msra.mxu0 0.0
    %394 = vmatprep.subr.mxu0 0.0
    %395 = vmatpush1.msra.mxu0 0.0
    %396 = vmatprep.subr.mxu0 0.0
    %397 = vmatpush1.msra.mxu0 0.0
    %398 = vmatprep.subr.mxu0 0.0
    %399 = vmatpush1.msra.mxu0 0.0
    %400 = vmatprep.subr.mxu0 0.0
    %401 = vmatpush1.msra.mxu0 0.0
    %402 = vmatprep.subr.mxu0 0.0
    %403 = vmatpush1.msra.mxu0 0.0
    %404 = vmatprep.subr.mxu0 0.0
    %405 = vmatpush1.msra.mxu0 0.0
    %406 = vmatprep.subr.mxu0 0.0
    %407 = vmatpush1.msra.mxu0 0.0
    %408 = vmatprep.subr.mxu0 0.0
    %409 = vmatpush1.msra.mxu0 0.0
    %410 = vmatprep.subr.mxu0 0.0
    %411 = vmatpush1.msra.mxu0 0.0
    %412 = vmatprep.subr.mxu0 0.0
    %413 = vmatpush1.msra.mxu0 0.0
    %414 = vmatprep.subr.mxu0 0.0
    %415 = vmatpush1.msra.mxu0 0.0
    %416 = vmatprep.subr.mxu0 0.0
    %417 = vmatpush1.msra.mxu0 0.0
    %418 = vmatprep.subr.mxu0 0.0
    %419 = vmatpush1.msra.mxu0 0.0
    %420 = vmatprep.subr.mxu0 0.0
    %421 = vmatpush1.msra.mxu0 0.0
    %422 = vmatprep.subr.mxu0 0.0
    %423 = vmatpush1.msra.mxu0 0.0
    %424 = vmatprep.subr.mxu0 0.0
    %425 = vmatpush1.msra.mxu0 0.0
    %426 = vmatprep.subr.mxu0 0.0
    %427 = vmatpush1.msra.mxu0 0.0
    %428 = vmatprep.subr.mxu0 0.0
    %429 = vmatpush1.msra.mxu0 0.0
    %430 = vmatprep.mubr.f32.mxu0 0.0
    %v431 = vand.u32 %v23, 4294901760
    %432 = vmatmul.mubr.f32.gmra.mrb[0].mxu0 %v431
    %v433 = vpop.f32.mrb[0].mxu0
    %v434 = vadd.f32 %v352, %v433
    %v435 = vpop.f32.mrb[0].mxu0
    %436 = vmatprep.mubr.f32.mxu0 0.0
    %v437 = vand.u32 %v26, 4294901760
    %438 = vmatmul.mubr.f32.gmra.mrb[0].mxu0 %v437
    %v439 = vpop.f32.mrb[0].mxu0
    %v440 = vadd.f32 %v360, %v439
    %v441 = vpop.f32.mrb[0].mxu0
    %442 = vdwg.mxu0
    %443 = vmatprep.subr.mxu0 0.0
    %v444 = vand.u32 %v30, 4294901760
    %445 = vmatpush1.msra.mxu0 %v444
    %446 = vmatprep.subr.mxu0 0.0
    %447 = vmatpush1.msra.mxu0 0.0
    %448 = vmatprep.subr.mxu0 0.0
    %449 = vmatpush1.msra.mxu0 0.0
    %450 = vmatprep.subr.mxu0 0.0
    %451 = vmatpush1.msra.mxu0 0.0
    %452 = vmatprep.subr.mxu0 0.0
    %453 = vmatpush1.msra.mxu0 0.0
    %454 = vmatprep.subr.mxu0 0.0
    %455 = vmatpush1.msra.mxu0 0.0
    %456 = vmatprep.subr.mxu0 0.0
    %457 = vmatpush1.msra.mxu0 0.0
    %458 = vmatprep.subr.mxu0 0.0
    %459 = vmatpush1.msra.mxu0 0.0
    %460 = vmatprep.subr.mxu0 0.0
    %461 = vmatpush1.msra.mxu0 0.0
    %462 = vmatprep.subr.mxu0 0.0
    %463 = vmatpush1.msra.mxu0 0.0
    %464 = vmatprep.subr.mxu0 0.0
    %465 = vmatpush1.msra.mxu0 0.0
    %466 = vmatprep.subr.mxu0 0.0
    %467 = vmatpush1.msra.mxu0 0.0
    %468 = vmatprep.subr.mxu0 0.0
    %469 = vmatpush1.msra.mxu0 0.0
    %470 = vmatprep.subr.mxu0 0.0
    %471 = vmatpush1.msra.mxu0 0.0
    %472 = vmatprep.subr.mxu0 0.0
    %473 = vmatpush1.msra.mxu0 0.0
    %474 = vmatprep.subr.mxu0 0.0
    %475 = vmatpush1.msra.mxu0 0.0
    %476 = vmatprep.subr.mxu0 0.0
    %477 = vmatpush1.msra.mxu0 0.0
    %478 = vmatprep.subr.mxu0 0.0
    %479 = vmatpush1.msra.mxu0 0.0
    %480 = vmatprep.subr.mxu0 0.0
    %481 = vmatpush1.msra.mxu0 0.0
    %482 = vmatprep.subr.mxu0 0.0
    %483 = vmatpush1.msra.mxu0 0.0
    %484 = vmatprep.subr.mxu0 0.0
    %485 = vmatpush1.msra.mxu0 0.0
    %486 = vmatprep.subr.mxu0 0.0
    %487 = vmatpush1.msra.mxu0 0.0
    %488 = vmatprep.subr.mxu0 0.0
    %489 = vmatpush1.msra.mxu0 0.0
    %490 = vmatprep.subr.mxu0 0.0
    %491 = vmatpush1.msra.mxu0 0.0
    %492 = vmatprep.subr.mxu0 0.0
    %493 = vmatpush1.msra.mxu0 0.0
    %494 = vmatprep.subr.mxu0 0.0
    %495 = vmatpush1.msra.mxu0 0.0
    %496 = vmatprep.subr.mxu0 0.0
    %497 = vmatpush1.msra.mxu0 0.0
    %498 = vmatprep.subr.mxu0 0.0
    %499 = vmatpush1.msra.mxu0 0.0
    %500 = vmatprep.subr.mxu0 0.0
    %501 = vmatpush1.msra.mxu0 0.0
    %502 = vmatprep.subr.mxu0 0.0
    %503 = vmatpush1.msra.mxu0 0.0
    %504 = vmatprep.subr.mxu0 0.0
    %505 = vmatpush1.msra.mxu0 0.0
    %506 = vmatprep.subr.mxu0 0.0
    %507 = vmatpush1.msra.mxu0 0.0
    %508 = vmatprep.mubr.f32.mxu0 0.0
    %v509 = vand.u32 %v23, 4294901760
    %510 = vmatmul.mubr.f32.gmra.mrb[0].mxu0 %v509
    %v511 = vpop.f32.mrb[0].mxu0
    %v512 = vadd.f32 %v434, %v511
    %v513 = vpop.f32.mrb[0].mxu0
    %514 = vmatprep.mubr.f32.mxu0 0.0
    %v515 = vand.u32 %v26, 4294901760
    %516 = vmatmul.mubr.f32.gmra.mrb[0].mxu0 %v515
    %v517 = vpop.f32.mrb[0].mxu0
    %v518 = vadd.f32 %v440, %v517
    %v519 = vpop.f32.mrb[0].mxu0
    %520 = vdwg.mxu0
    %v521 = vld [vmem:[%s2] sm:$0x1]
    %v523 = vlaneseq
    %v524 = vshrl.u32 %v523, 7
    %v525 = vsub.s32 0, %v524
    %v526 = vrot.slane %v521, %v525
    %v528 = vmul.f32 %v512, %v526
    %v529 = vmul.f32 %v518, %v526
    %v530 = vld [vmem:[%s3] sm:$0x1]
    %v532 = vlaneseq
    %v533 = vshrl.u32 %v532, 7
    %v534 = vsub.s32 0, %v533
    %v535 = vrot.slane %v530, %v534
    %v537 = vadd.f32 %v528, %v535
    %v538 = vadd.f32 %v529, %v535
    %v539 = vand.u32 2147483647, %v537
    %vm540 = vcmp.le.f32.partialorder %v539, 0.7853982
    %vm541 = vcmp.lt.s32.totalorder %v537, 0
    %v542 = vand.u32 %v537, 2139095040
    %v543 = vshrl.u32 %v542, 23
    %v544 = vsub.s32 %v543, 127
    %v545 = vand.u32 2147483647, %v537
    %v546 = vand.u32 %v545, 8388607
    %v547 = vor.u32 %v546, 8388608
    %v548 = vsub.s32 0, %v547
    %v549 = vadd.s32 %v544, 1
    %vm550 = vcmp.gt.s32.totalorder %v549, 0
    %v551 = vsel %vm550, %v549, 0
    %v552 = vshrl.u32 %v551, 5
    %v553 = vand.u32 %v551, 31
    %v554 = vsub.s32 32, %v553
    %v555 = vshrl.u32 683565275, %v554
    %v556 = vshll.u32 683565275, %v553
    %v557 = vshrl.u32 2475754826, %v554
    %v558 = vor.u32 %v556, %v557
    %v559 = vshll.u32 2475754826, %v553
    %v560 = vshrl.u32 2131351028, %v554
    %v561 = vor.u32 %v559, %v560
    %v562 = vshll.u32 2131351028, %v553
    %v563 = vshrl.u32 2102212464, %v554
    %v564 = vor.u32 %v562, %v563
    %v565 = vshll.u32 2102212464, %v553
    %v566 = vshrl.u32 920167782, %v554
    %v567 = vor.u32 %v565, %v566
    %v568 = vshll.u32 920167782, %v553
    %v569 = vshrl.u32 1326507024, %v554
    %v570 = vor.u32 %v568, %v569
    %vm571 = vcmp.lt.s32.totalorder %v552, 1
    %vm572 = vcmp.lt.s32.totalorder %v552, 2
    %vm573 = vcmp.lt.s32.totalorder %v552, 3
    %vm574 = vcmp.lt.s32.totalorder %v552, 4
    %v575 = vsel %vm571, %v555, %v558
    %v576 = vsel %vm574, %v564, 2102212464
    %v577 = vsel %vm573, %v561, %v576
    %v578 = vsel %vm572, %v575, %v577
    %v579 = vsel %vm571, %v558, %v561
    %v580 = vsel %vm574, %v567, 920167782
    %v581 = vsel %vm573, %v564, %v580
    %v582 = vsel %vm572, %v579, %v581
    %v583 = vsel %vm571, %v561, %v564
    %v584 = vsel %vm574, %v570, 1326507024
    %v585 = vsel %vm573, %v567, %v584
    %v586 = vsel %vm572, %v583, %v585
    %v587 = vshll.u32 %v547, 8
    %v588 = vmul.u32.u64.compose %v587, %v586
    %v589 = vextract.low.u32 %v588
    %v590 = vextract.high.u32 %v588
    %v591 = vmul.u32.u64.compose %v587, %v582
    %v592 = vextract.low.u32 %v591
    %v593 = vextract.high.u32 %v591
    %v594 = vmul.u32 %v587, %v578
    %v595 = vadd.s32 %v590, %v592
    %vm596 = vc.u32 %v590, %v592
    %v597 = vadd.s32 %v593, 1
    %v598 = vsel %vm596, %v597, %v593
    %v599 = vadd.s32 %v594, %v598
    %v600 = vadd.s32 %v599, 536870912
    %v601 = vshrl.u32 %v600, 30
    %v602 = vshll.u32 %v601, 30
    %v603 = vsub.s32 %v599, %v602
    %vm604 = vcmp.lt.s32.totalorder %v603, 0
    %v605 = vsub.s32 0, %v603
    %v606 = vsel %vm604, %v605, %v603
    %v607 = vclz %v606
    %v608 = vsub.s32 %v607, 2
    %vm609 = vcmp.gt.s32.totalorder 0, %v608
    %v610 = vsel %vm609, 0, %v608
    %v611 = vsub.s32 32, %v610
    %v612 = vshll.u32 %v603, %v610
    %v613 = vshrl.u32 %v595, %v611
    %v614 = vor.u32 %v612, %v613
    %v615 = vsub.s32 4294967266, %v610
    %v616 = vadd.s32 %v615, 127
    %v617 = vshll.u32 %v616, 23
    %v618 = vor.u32 4788187, %v617
    %v619 = vand.u32 2147483647, %v618
    %v621 = vcvt.s32.f32 %v614
    %v622 = vmul.f32 %v621, %v619
    %v623 = vxor.u32 %v622, 2147483648
    %v624 = vsel %vm541, %v623, %v622
    %v625 = vsub.s32 4, %v601
    %v626 = vsel %vm541, %v625, %v601
    %v627 = vsel %vm540, %v537, %v624
    %v628 = vsel %vm540, 0, %v626
    %v629 = vcosq.f32.pop %v627
    %v630 = vsinq.f32.pop %v627
    %vm631 = vweird.f32 %v537
    %v632 = vadd.s32 %v628, 3
    %v633 = vand.u32 %v632, 3
    %vm634 = vcmp.lt.s32.totalorder %v633, 2
    %vm635 = vcmp.eq.s32.totalorder %v633, 0
    %v636 = vxor.u32 %v630, 2147483648
    %v637 = vsel %vm635, %v629, %v636
    %vm638 = vcmp.eq.s32.totalorder %v633, 2
    %v639 = vxor.u32 %v629, 2147483648
    %v640 = vsel %vm638, %v639, %v630
    %v641 = vsel %vm634, %v637, %v640
    %v642 = vsel %vm631, nan, %v641
    %v643 = vand.u32 2147483647, %v538
    %vm644 = vcmp.le.f32.partialorder %v643, 0.7853982
    %vm645 = vcmp.lt.s32.totalorder %v538, 0
    %v646 = vand.u32 %v538, 2139095040
    %v647 = vshrl.u32 %v646, 23
    %v648 = vsub.s32 %v647, 127
    %v649 = vand.u32 2147483647, %v538
    %v650 = vand.u32 %v649, 8388607
    %v651 = vor.u32 %v650, 8388608
    %v652 = vsub.s32 0, %v651
    %v653 = vadd.s32 %v648, 1
    %vm654 = vcmp.gt.s32.totalorder %v653, 0
    %v655 = vsel %vm654, %v653, 0
    %v656 = vshrl.u32 %v655, 5
    %v657 = vand.u32 %v655, 31
    %v658 = vsub.s32 32, %v657
    %v659 = vshrl.u32 683565275, %v658
    %v660 = vshll.u32 683565275, %v657
    %v661 = vshrl.u32 2475754826, %v658
    %v662 = vor.u32 %v660, %v661
    %v663 = vshll.u32 2475754826, %v657
    %v664 = vshrl.u32 2131351028, %v658
    %v665 = vor.u32 %v663, %v664
    %v666 = vshll.u32 2131351028, %v657
    %v667 = vshrl.u32 2102212464, %v658
    %v668 = vor.u32 %v666, %v667
    %v669 = vshll.u32 2102212464, %v657
    %v670 = vshrl.u32 920167782, %v658
    %v671 = vor.u32 %v669, %v670
    %v672 = vshll.u32 920167782, %v657
    %v673 = vshrl.u32 1326507024, %v658
    %v674 = vor.u32 %v672, %v673
    %vm675 = vcmp.lt.s32.totalorder %v656, 1
    %vm676 = vcmp.lt.s32.totalorder %v656, 2
    %vm677 = vcmp.lt.s32.totalorder %v656, 3
    %vm678 = vcmp.lt.s32.totalorder %v656, 4
    %v679 = vsel %vm675, %v659, %v662
    %v680 = vsel %vm678, %v668, 2102212464
    %v681 = vsel %vm677, %v665, %v680
    %v682 = vsel %vm676, %v679, %v681
    %v683 = vsel %vm675, %v662, %v665
    %v684 = vsel %vm678, %v671, 920167782
    %v685 = vsel %vm677, %v668, %v684
    %v686 = vsel %vm676, %v683, %v685
    %v687 = vsel %vm675, %v665, %v668
    %v688 = vsel %vm678, %v674, 1326507024
    %v689 = vsel %vm677, %v671, %v688
    %v690 = vsel %vm676, %v687, %v689
    %v691 = vshll.u32 %v651, 8
    %v692 = vmul.u32.u64.compose %v691, %v690
    %v693 = vextract.low.u32 %v692
    %v694 = vextract.high.u32 %v692
    %v695 = vmul.u32.u64.compose %v691, %v686
    %v696 = vextract.low.u32 %v695
    %v697 = vextract.high.u32 %v695
    %v698 = vmul.u32 %v691, %v682
    %v699 = vadd.s32 %v694, %v696
    %vm700 = vc.u32 %v694, %v696
    %v701 = vadd.s32 %v697, 1
    %v702 = vsel %vm700, %v701, %v697
    %v703 = vadd.s32 %v698, %v702
    %v704 = vadd.s32 %v703, 536870912
    %v705 = vshrl.u32 %v704, 30
    %v706 = vshll.u32 %v705, 30
    %v707 = vsub.s32 %v703, %v706
    %vm708 = vcmp.lt.s32.totalorder %v707, 0
    %v709 = vsub.s32 0, %v707
    %v710 = vsel %vm708, %v709, %v707
    %v711 = vclz %v710
    %v712 = vsub.s32 %v711, 2
    %vm713 = vcmp.gt.s32.totalorder 0, %v712
    %v714 = vsel %vm713, 0, %v712
    %v715 = vsub.s32 32, %v714
    %v716 = vshll.u32 %v707, %v714
    %v717 = vshrl.u32 %v699, %v715
    %v718 = vor.u32 %v716, %v717
    %v719 = vsub.s32 4294967266, %v714
    %v720 = vadd.s32 %v719, 127
    %v721 = vshll.u32 %v720, 23
    %v722 = vor.u32 4788187, %v721
    %v723 = vand.u32 2147483647, %v722
    %v725 = vcvt.s32.f32 %v718
    %v726 = vmul.f32 %v725, %v723
    %v727 = vxor.u32 %v726, 2147483648
    %v728 = vsel %vm645, %v727, %v726
    %v729 = vsub.s32 4, %v705
    %v730 = vsel %vm645, %v729, %v705
    %v731 = vsel %vm644, %v538, %v728
    %v732 = vsel %vm644, 0, %v730
    %v733 = vcosq.f32.pop %v731
    %v734 = vsinq.f32.pop %v731
    %vm735 = vweird.f32 %v538
    %v736 = vadd.s32 %v732, 3
    %v737 = vand.u32 %v736, 3
    %vm738 = vcmp.lt.s32.totalorder %v737, 2
    %vm739 = vcmp.eq.s32.totalorder %v737, 0
    %v740 = vxor.u32 %v734, 2147483648
    %v741 = vsel %vm739, %v733, %v740
    %vm742 = vcmp.eq.s32.totalorder %v737, 2
    %v743 = vxor.u32 %v733, 2147483648
    %v744 = vsel %vm742, %v743, %v734
    %v745 = vsel %vm738, %v741, %v744
    %v746 = vsel %vm735, nan, %v745
    %vm747 = vcmask 392192
    %748 = vst.msk [vmem:[#allocation2] sm:$0xff] %vm747, %v642
    %749 = vst.msk [vmem:[#allocation2 + $0x8] sm:$0xff] %vm747, %v746
    // Predicated region
    $region18: #{tpu_custom_call.1} parent=1 // pred_check
      _
    $region19: #{tpu_custom_call.1} parent=1 // pred_check_branch
      %751 = sbr.rel (0) target = $region21
    $region20: #{tpu_custom_call.1} parent=1 // pred_region
      %s753 = ssub.s32 256, 256
      %754 = vsyncadd [#allocation3], %s753
      %s755 = sshll.u32 [#allocation2], 4
      %s756 = int_to_ptr.vmem [resolvable:$true] %s755
      %761 = dma.vmem_to_hbm [thread:$0]  %s756, 256, %s4, [#allocation3], 128, 128, 8
    $region21: #{tpu_custom_call.1} parent=1 // pred_fallthru
      _
    // Predicated region
    $region22: #{tpu_custom_call.1} parent=1 // pred_check
      _
    $region23: #{tpu_custom_call.1} parent=1 // pred_check_branch
      %763 = sbr.rel (0) target = $region25
    $region24: #{tpu_custom_call.1} parent=1 // pred_region
      %764 = dma.done [#allocation3], 256
    $region25: #{tpu_custom_call.1} parent=1 // pred_fallthru
      _
    %765 = vsyncpa [#allocation3], 1

</llo_original>
